<compile_context>
chip_gen: v7x
topology: tpu7x:2x2x1
jax: 0.10.0
libtpu: 0.0.40
codegen_flags: <defaults>
</compile_context>

<pallas_src>
import math
import jax
import jax.numpy as jnp
from jax import lax
from jax.experimental import pallas as pl
from jax.experimental.pallas import tpu as pltpu

# ---------------------------------------------------------------------------
# Problem sizes (consistent with the module: n_neurons_target="64,32,32")
# ---------------------------------------------------------------------------
N_NODES = 16              # n_nodes
EMB = 16                  # embedding_size
H0, H1, H2 = 64, 32, 32   # n_neurons
ACTION = 8                # action_size
IN_SIZE = 2 * N_NODES + 2 * EMB   # 64
OUT_LANES = 128           # lane-dense output slab; real q lives in lanes [0:ACTION]

# ---------------------------------------------------------------------------
# Lane-dense packed-parameter layout: ONE (136, 128) f32 buffer.
#   rows   0.. 63 : fc1_w [lanes 0:64] | fc2_w [64:96] | gc2_w [96:112]
#   rows  64.. 95 : fc3_w [lanes 0:32]
#   rows  96..127 : fc4_w [lanes 0:8], lanes 8:128 are zero  -> padded fc4 weight
#   row  128      : gc1_w [0:64] | gc1_b [64:128]
#   row  129      : fc1_b [0:64] | fc2_b [64:96] | fc3_b [96:128]
#   row  130      : fc4_b [0:8], rest zero  -> padded fc4 bias (full row used)
#   row  131      : gc2_b [0:16]
#   rows 132..135 : padding (8-row alignment)
# ---------------------------------------------------------------------------
PARAM_LANES = 128
PARAM_ROWS = 136

# name: (row_off, lane_off, rows, cols)
_PLACEMENT = {
    "fc1_w": (0,   0,  IN_SIZE, H0),
    "fc2_w": (0,  64,  H0, H1),
    "gc2_w": (0,  96,  H0, EMB),
    "fc3_w": (64,  0,  H1, H2),
    "fc4_w": (96,  0,  H2, ACTION),
    "gc1_w": (128, 0,  1, H0),
    "gc1_b": (128, 64, 1, H0),
    "fc1_b": (129, 0,  1, H0),
    "fc2_b": (129, 64, 1, H1),
    "fc3_b": (129, 96, 1, H2),
    "fc4_b": (130, 0,  1, ACTION),
    "gc2_b": (131, 0,  1, EMB),
}


def pack_params(p):
    """Pack all weights/biases into one lane-dense (136, 128) f32 buffer.

    Call ONCE at parameter-init time and cache the result; do NOT call per forward.
    """
    buf = jnp.zeros((PARAM_ROWS, PARAM_LANES), jnp.float32)
    for name, (r, c, rows, cols) in _PLACEMENT.items():
        w = p[name].reshape(rows, cols).astype(jnp.float32)
        buf = buf.at[r:r + rows, c:c + cols].set(w)
    return buf


# ---------------------------------------------------------------------------
# Fused Pallas kernel: GCN trunk + log_softmax + one-hot row gather + dense head
# ---------------------------------------------------------------------------
def _gcn_action_kernel(start_ref, end_ref,        # scalar prefetch (SMEM, (B,) int32)
                       state_ref, params_ref,     # VMEM inputs
                       q_ref):                    # output (B, 128)
    n = state_ref.shape[0]
    bsz = q_ref.shape[0]

    # ---- Parameter views: full-lane (unmasked) loads, then value slices -----
    wg0 = params_ref[0:IN_SIZE, :]                        # (64, 128)
    fc1_w = wg0[:, 0:H0]
    fc2_w = wg0[:, H0:H0 + H1]
    gc2_w = wg0[:, H0 + H1:H0 + H1 + EMB]
    wg1 = params_ref[64:96, :]                            # (32, 128)
    fc3_w = wg1[:, 0:H2]
    fc4_w = params_ref[96:128, :]                         # (32, 128) lane-padded
    br0 = params_ref[128:129, :]
    gc1_w = br0[:, 0:H0]
    gc1_b = br0[:, H0:2 * H0]
    br1 = params_ref[129:130, :]
    fc1_b = br1[:, 0:H0]
    fc2_b = br1[:, H0:H0 + H1]
    fc3_b = br1[:, H0 + H1:H0 + H1 + H2]
    fc4_b = params_ref[130:131, :]                        # (1, 128) lane-padded
    gc2_b = params_ref[131:132, :][:, 0:EMB]

    # ---- GCN trunk (once; shared by all batch elements) ---------------------
    state = state_ref[...].astype(jnp.float32)            # (N, N)
    row = lax.broadcasted_iota(jnp.int32, (n, n), 0)
    col = lax.broadcasted_iota(jnp.int32, (n, n), 1)
    diag = row == col

    # x = torch.diag(state).unsqueeze(1); adj = state.clone().fill_diagonal_(0)
    x0 = jnp.sum(jnp.where(diag, state, 0.0), axis=1, keepdims=True)  # (N, 1)
    adj = jnp.where(diag, 0.0, state)                                 # (N, N)

    support1 = x0 * gc1_w                                  # K==1 matmul as outer product
    h = jnp.maximum(
        jnp.dot(adj, support1, preferred_element_type=jnp.float32) + gc1_b, 0.0)
    # fn.dropout(p=0.5) -> identity at inference
    sup2 = jnp.dot(h, gc2_w, preferred_element_type=jnp.float32)      # (N, EMB)
    e = jnp.maximum(
        jnp.dot(adj, sup2, preferred_element_type=jnp.float32) + gc2_b, 0.0)

    # log_softmax over the feature axis
    m = jnp.max(e, axis=1, keepdims=True)
    z = e - m
    logp = z - jnp.log(jnp.sum(jnp.exp(z), axis=1, keepdims=True))    # (N, EMB)

    # ---- Row gather via one-hot matmul (batched; no dynamic sublane slices) -
    lane_n = lax.broadcasted_iota(jnp.int32, (1, n), 1)
    oh_s = jnp.concatenate(
        [(lane_n == start_ref[b]).astype(jnp.float32) for b in range(bsz)], axis=0)
    oh_e = jnp.concatenate(
        [(lane_n == end_ref[b]).astype(jnp.float32) for b in range(bsz)], axis=0)

    sf = jnp.dot(oh_s, state, preferred_element_type=jnp.float32)     # state[start, :]
    tf = jnp.dot(oh_e, state, preferred_element_type=jnp.float32)     # state[end, :]
    es = jnp.dot(oh_s, logp, preferred_element_type=jnp.float32)      # logp[start]
    et = jnp.dot(oh_e, logp, preferred_element_type=jnp.float32)      # logp[end]
    edge = jnp.concatenate([sf, tf, es, et], axis=1)                  # (B, 2N+2E)

    # ---- Dense head: one batched matmul chain over all B rows ---------------
    h1 = jnp.maximum(
        jnp.dot(edge, fc1_w, preferred_element_type=jnp.float32) + fc1_b, 0.0)
    h2 = jnp.maximum(
        jnp.dot(h1, fc2_w, preferred_element_type=jnp.float32) + fc2_b, 0.0)
    # self.d1 dropout -> identity at inference
    h3 = jnp.maximum(
        jnp.dot(h2, fc3_w, preferred_element_type=jnp.float32) + fc3_b, 0.0)
    # fc4 weight/bias are zero-padded to 128 lanes -> lanes ACTION..127 come out 0
    q = jnp.maximum(
        jnp.dot(h3, fc4_w, preferred_element_type=jnp.float32) + fc4_b, 0.0)

    q_ref[...] = q.astype(q_ref.dtype)                    # unmasked full-lane store


# ---------------------------------------------------------------------------
# Wrapper (jitted; packed params are built once outside and passed in)
# ---------------------------------------------------------------------------
@jax.jit
def graph_action_network(state, start, end, packed_params):
    """state: (N, N) f32; start/end: (B,) int32; packed_params: (136, 128) f32.

    Returns (ACTION,) f32 (B == 1, squeezed like the torch module)."""
    n = state.shape[0]
    bsz = start.shape[0]

    out = pl.pallas_call(
        _gcn_action_kernel,
        out_shape=jax.ShapeDtypeStruct((bsz, OUT_LANES), jnp.float32),
        grid_spec=pltpu.PrefetchScalarGridSpec(
            num_scalar_prefetch=2,
            grid=(1,),
            in_specs=[
                pl.BlockSpec((n, n), lambda i, s_ref, e_ref: (0, 0)),
                pl.BlockSpec((PARAM_ROWS, PARAM_LANES),
                             lambda i, s_ref, e_ref: (0, 0)),
            ],
            out_specs=pl.BlockSpec((bsz, OUT_LANES), lambda i, s_ref, e_ref: (0, 0)),
        ),
        compiler_params=pltpu.CompilerParams(dimension_semantics=("arbitrary",)),
    )(start, end, state, packed_params)

    return out[0, :ACTION]  # action_q.squeeze(0)


# ---------------------------------------------------------------------------
# Deterministic parameter init (shapes match the PyTorch module __init__)
# ---------------------------------------------------------------------------
def init_params(key):
    ks = jax.random.split(key, 12)

    def uni(k, shape, bound):
        return jax.random.uniform(k, shape, jnp.float32, -bound, bound)

    def xavier(k, fan_in, fan_out):
        bound = math.sqrt(6.0 / (fan_in + fan_out))
        return uni(k, (fan_in, fan_out), bound)  # stored as (in, out)

    p = {}
    # GraphConvolution(1, H0) / (H0, EMB): uniform(-1/sqrt(out), 1/sqrt(out))
    p["gc1_w"] = uni(ks[0], (1, H0), 1.0 / math.sqrt(H0))
    p["gc1_b"] = uni(ks[1], (1, H0), 1.0 / math.sqrt(H0))
    p["gc2_w"] = uni(ks[2], (H0, EMB), 1.0 / math.sqrt(EMB))
    p["gc2_b"] = uni(ks[3], (1, EMB), 1.0 / math.sqrt(EMB))
    # Linear layers (xavier_uniform weights, small-uniform biases), weights as (in, out)
    p["fc1_w"] = xavier(ks[4], IN_SIZE, H0)
    p["fc1_b"] = uni(ks[5], (1, H0), 1.0 / math.sqrt(IN_SIZE))
    p["fc2_w"] = xavier(ks[6], H0, H1)
    p["fc2_b"] = uni(ks[7], (1, H1), 1.0 / math.sqrt(H0))
    p["fc3_w"] = xavier(ks[8], H1, H2)
    p["fc3_b"] = uni(ks[9], (1, H2), 1.0 / math.sqrt(H1))
    p["fc4_w"] = xavier(ks[10], H2, ACTION)
    p["fc4_b"] = uni(ks[11], (1, ACTION), 1.0 / math.sqrt(H2))
    return p


# ---------------------------------------------------------------------------
# Pure-JAX reference (same math, no Pallas) for a sanity check
# ---------------------------------------------------------------------------
def reference_forward(state, start, end, p):
    x0 = jnp.diag(state)[:, None]
    adj = state * (1.0 - jnp.eye(state.shape[0], dtype=state.dtype))
    h = jax.nn.relu(adj @ (x0 * p["gc1_w"]) + p["gc1_b"])
    e = jax.nn.relu(adj @ (h @ p["gc2_w"]) + p["gc2_b"])
    logp = jax.nn.log_softmax(e, axis=1)
    edge = jnp.concatenate(
        [state[start, :], state[end, :], logp[start], logp[end]], axis=1)
    h1 = jax.nn.relu(edge @ p["fc1_w"] + p["fc1_b"])
    h2 = jax.nn.relu(h1 @ p["fc2_w"] + p["fc2_b"])
    h3 = jax.nn.relu(h2 @ p["fc3_w"] + p["fc3_b"])
    q = jax.nn.relu(h3 @ p["fc4_w"] + p["fc4_b"])
    return q[0]


if __name__ == "__main__":
    key = jax.random.PRNGKey(0)
    k_state, k_params = jax.random.split(key)

    # Synthetic state-definition matrix: random symmetric weights + nonzero diagonal.
    raw = jax.random.uniform(k_state, (N_NODES, N_NODES), jnp.float32)
    state = 0.5 * (raw + raw.T) + jnp.eye(N_NODES, dtype=jnp.float32)

    start = jnp.array([3], dtype=jnp.int32)
    end = jnp.array([11], dtype=jnp.int32)

    params = init_params(k_params)
    # Pack ONCE (would be cached alongside the parameters in a real agent).
    packed = jax.block_until_ready(pack_params(params))

    q = graph_action_network(state, start, end, packed)
    q = jax.block_until_ready(q)

    q_ref = reference_forward(state, start, end, params)
    assert q.shape == (ACTION,)
    assert jnp.allclose(q, q_ref, rtol=1e-2, atol=1e-2), (q, q_ref)

    print("KERNEL_OK")
</pallas_src>

<mosaic_0001>
module attributes {stable_mosaic.version = 11 : i64} {
  func.func @_gcn_action_kernel(%arg0: i32, %arg1: memref<1xi32, #tpu.memory_space<smem>>, %arg2: memref<1xi32, #tpu.memory_space<smem>>, %arg3: memref<16x16xf32, #tpu.memory_space<vmem>>, %arg4: memref<136x128xf32, #tpu.memory_space<vmem>>, %arg5: memref<1x128xf32, #tpu.memory_space<vmem>>) attributes {dimension_semantics = [#tpu.dimension_semantics<arbitrary>], iteration_bounds = array<i64: 1>, scalar_prefetch = 2 : i64, scratch_operands = 0 : i64, tpu.core_type = #tpu.core_type<tc>, window_params = [{pipeline_mode = #tpu.pipeline_mode<synchronous>, transform_indices = @transform_0, window_bounds = array<i64: 16, 16>}, {pipeline_mode = #tpu.pipeline_mode<synchronous>, transform_indices = @transform_1, window_bounds = array<i64: 136, 128>}, {pipeline_mode = #tpu.pipeline_mode<synchronous>, transform_indices = @transform_2, window_bounds = array<i64: 1, 128>}]} {
    %c0 = arith.constant 0 : index
    %c0_0 = arith.constant 0 : index
    %0 = vector.load %arg4[%c0, %c0_0] : memref<136x128xf32, #tpu.memory_space<vmem>>, vector<64x128xf32>
    %1 = vector.extract_strided_slice %0 {offsets = [0, 0], sizes = [64, 64], strides = [1, 1]} : vector<64x128xf32> to vector<64x64xf32>
    %2 = vector.extract_strided_slice %0 {offsets = [0, 64], sizes = [64, 32], strides = [1, 1]} : vector<64x128xf32> to vector<64x32xf32>
    %3 = vector.extract_strided_slice %0 {offsets = [0, 96], sizes = [64, 16], strides = [1, 1]} : vector<64x128xf32> to vector<64x16xf32>
    %c64 = arith.constant 64 : index
    %c0_1 = arith.constant 0 : index
    %4 = vector.load %arg4[%c64, %c0_1] : memref<136x128xf32, #tpu.memory_space<vmem>>, vector<32x128xf32>
    %5 = vector.extract_strided_slice %4 {offsets = [0, 0], sizes = [32, 32], strides = [1, 1]} : vector<32x128xf32> to vector<32x32xf32>
    %c96 = arith.constant 96 : index
    %c0_2 = arith.constant 0 : index
    %6 = vector.load %arg4[%c96, %c0_2] : memref<136x128xf32, #tpu.memory_space<vmem>>, vector<32x128xf32>
    %c128 = arith.constant 128 : index
    %c0_3 = arith.constant 0 : index
    %7 = vector.load %arg4[%c128, %c0_3] : memref<136x128xf32, #tpu.memory_space<vmem>>, vector<1x128xf32>
    %8 = vector.extract_strided_slice %7 {offsets = [0, 0], sizes = [1, 64], strides = [1, 1]} : vector<1x128xf32> to vector<1x64xf32>
    %9 = vector.extract_strided_slice %7 {offsets = [0, 64], sizes = [1, 64], strides = [1, 1]} : vector<1x128xf32> to vector<1x64xf32>
    %c129 = arith.constant 129 : index
    %c0_4 = arith.constant 0 : index
    %10 = vector.load %arg4[%c129, %c0_4] : memref<136x128xf32, #tpu.memory_space<vmem>>, vector<1x128xf32>
    %11 = vector.extract_strided_slice %10 {offsets = [0, 0], sizes = [1, 64], strides = [1, 1]} : vector<1x128xf32> to vector<1x64xf32>
    %12 = vector.extract_strided_slice %10 {offsets = [0, 64], sizes = [1, 32], strides = [1, 1]} : vector<1x128xf32> to vector<1x32xf32>
    %13 = vector.extract_strided_slice %10 {offsets = [0, 96], sizes = [1, 32], strides = [1, 1]} : vector<1x128xf32> to vector<1x32xf32>
    %c130 = arith.constant 130 : index
    %c0_5 = arith.constant 0 : index
    %14 = vector.load %arg4[%c130, %c0_5] : memref<136x128xf32, #tpu.memory_space<vmem>>, vector<1x128xf32>
    %c131 = arith.constant 131 : index
    %c0_6 = arith.constant 0 : index
    %15 = vector.load %arg4[%c131, %c0_6] : memref<136x128xf32, #tpu.memory_space<vmem>>, vector<1x128xf32>
    %16 = vector.extract_strided_slice %15 {offsets = [0, 0], sizes = [1, 16], strides = [1, 1]} : vector<1x128xf32> to vector<1x16xf32>
    %c0_7 = arith.constant 0 : index
    %c0_8 = arith.constant 0 : index
    %17 = vector.load %arg3[%c0_7, %c0_8] : memref<16x16xf32, #tpu.memory_space<vmem>>, vector<16x16xf32>
    %18 = tpu.iota {dimensions = array<i32: 0>} : vector<16x16xi32>
    %19 = tpu.iota {dimensions = array<i32: 1>} : vector<16x16xi32>
    %20 = arith.cmpi eq, %18, %19 : vector<16x16xi32>
    %cst = arith.constant 0.000000e+00 : f32
    %21 = vector.broadcast %cst : f32 to vector<16x16xf32>
    %22 = arith.select %20, %17, %21 : vector<16x16xi1>, vector<16x16xf32>
    %cst_9 = arith.constant dense<0.000000e+00> : vector<16xf32>
    %23 = vector.multi_reduction <add>, %22, %cst_9 [1] : vector<16x16xf32> to vector<16xf32>
    %24 = vector.shape_cast %23 : vector<16xf32> to vector<16x1xf32>
    %cst_10 = arith.constant 0.000000e+00 : f32
    %25 = vector.broadcast %cst_10 : f32 to vector<16x16xf32>
    %26 = arith.select %20, %25, %17 : vector<16x16xi1>, vector<16x16xf32>
    %27 = vector.broadcast %24 : vector<16x1xf32> to vector<16x64xf32>
    %28 = vector.broadcast %8 : vector<1x64xf32> to vector<16x64xf32>
    %29 = arith.mulf %27, %28 : vector<16x64xf32>
    %cst_11 = arith.constant dense<0.000000e+00> : vector<16x64xf32>
    %30 = tpu.matmul %26, %29, %cst_11 {dimension_numbers = #tpu.dot_dimension_numbers<[1], [0], [0], [1], [0, 0, 1, 1], [], []>} : vector<16x16xf32>, vector<16x64xf32>, vector<16x64xf32> -> vector<16x64xf32>
    %31 = vector.broadcast %9 : vector<1x64xf32> to vector<16x64xf32>
    %32 = arith.addf %30, %31 : vector<16x64xf32>
    %cst_12 = arith.constant 0.000000e+00 : f32
    %33 = vector.broadcast %cst_12 : f32 to vector<16x64xf32>
    %34 = arith.maximumf %32, %33 : vector<16x64xf32>
    %cst_13 = arith.constant dense<0.000000e+00> : vector<16x16xf32>
    %35 = tpu.matmul %34, %3, %cst_13 {dimension_numbers = #tpu.dot_dimension_numbers<[1], [0], [0], [1], [0, 0, 1, 1], [], []>} : vector<16x64xf32>, vector<64x16xf32>, vector<16x16xf32> -> vector<16x16xf32>
    %cst_14 = arith.constant dense<0.000000e+00> : vector<16x16xf32>
    %36 = tpu.matmul %26, %35, %cst_14 {dimension_numbers = #tpu.dot_dimension_numbers<[1], [0], [0], [1], [0, 0, 1, 1], [], []>} : vector<16x16xf32>, vector<16x16xf32>, vector<16x16xf32> -> vector<16x16xf32>
    %37 = vector.broadcast %16 : vector<1x16xf32> to vector<16x16xf32>
    %38 = arith.addf %36, %37 : vector<16x16xf32>
    %cst_15 = arith.constant 0.000000e+00 : f32
    %39 = vector.broadcast %cst_15 : f32 to vector<16x16xf32>
    %40 = arith.maximumf %38, %39 : vector<16x16xf32>
    %cst_16 = arith.constant dense<0xFF800000> : vector<16xf32>
    %41 = vector.multi_reduction <maximumf>, %40, %cst_16 [1] : vector<16x16xf32> to vector<16xf32>
    %42 = vector.shape_cast %41 : vector<16xf32> to vector<16x1xf32>
    %43 = vector.broadcast %42 : vector<16x1xf32> to vector<16x16xf32>
    %44 = arith.subf %40, %43 : vector<16x16xf32>
    %45 = math.exp %44 : vector<16x16xf32>
    %cst_17 = arith.constant dense<0.000000e+00> : vector<16xf32>
    %46 = vector.multi_reduction <add>, %45, %cst_17 [1] : vector<16x16xf32> to vector<16xf32>
    %47 = vector.shape_cast %46 : vector<16xf32> to vector<16x1xf32>
    %48 = math.log %47 : vector<16x1xf32>
    %49 = vector.broadcast %48 : vector<16x1xf32> to vector<16x16xf32>
    %50 = arith.subf %44, %49 : vector<16x16xf32>
    %51 = tpu.iota {dimensions = array<i32: 1>} : vector<1x16xi32>
    %c0_18 = arith.constant 0 : index
    %52 = memref.load %arg1[%c0_18] : memref<1xi32, #tpu.memory_space<smem>>
    %53 = vector.broadcast %52 : i32 to vector<1x16xi32>
    %54 = arith.cmpi eq, %51, %53 : vector<1x16xi32>
    %55 = arith.extui %54 : vector<1x16xi1> to vector<1x16xi32>
    %56 = arith.sitofp %55 : vector<1x16xi32> to vector<1x16xf32>
    %c0_19 = arith.constant 0 : index
    %57 = memref.load %arg2[%c0_19] : memref<1xi32, #tpu.memory_space<smem>>
    %58 = vector.broadcast %57 : i32 to vector<1x16xi32>
    %59 = arith.cmpi eq, %51, %58 : vector<1x16xi32>
    %60 = arith.extui %59 : vector<1x16xi1> to vector<1x16xi32>
    %61 = arith.sitofp %60 : vector<1x16xi32> to vector<1x16xf32>
    %cst_20 = arith.constant dense<0.000000e+00> : vector<1x16xf32>
    %62 = tpu.matmul %56, %17, %cst_20 {dimension_numbers = #tpu.dot_dimension_numbers<[1], [0], [0], [1], [0, 0, 1, 1], [], []>} : vector<1x16xf32>, vector<16x16xf32>, vector<1x16xf32> -> vector<1x16xf32>
    %cst_21 = arith.constant dense<0.000000e+00> : vector<1x16xf32>
    %63 = tpu.matmul %61, %17, %cst_21 {dimension_numbers = #tpu.dot_dimension_numbers<[1], [0], [0], [1], [0, 0, 1, 1], [], []>} : vector<1x16xf32>, vector<16x16xf32>, vector<1x16xf32> -> vector<1x16xf32>
    %cst_22 = arith.constant dense<0.000000e+00> : vector<1x16xf32>
    %64 = tpu.matmul %56, %50, %cst_22 {dimension_numbers = #tpu.dot_dimension_numbers<[1], [0], [0], [1], [0, 0, 1, 1], [], []>} : vector<1x16xf32>, vector<16x16xf32>, vector<1x16xf32> -> vector<1x16xf32>
    %cst_23 = arith.constant dense<0.000000e+00> : vector<1x16xf32>
    %65 = tpu.matmul %61, %50, %cst_23 {dimension_numbers = #tpu.dot_dimension_numbers<[1], [0], [0], [1], [0, 0, 1, 1], [], []>} : vector<1x16xf32>, vector<16x16xf32>, vector<1x16xf32> -> vector<1x16xf32>
    %66 = tpu.concatenate %62, %63, %64, %65 in 1 : vector<1x16xf32>, vector<1x16xf32>, vector<1x16xf32>, vector<1x16xf32> -> vector<1x64xf32>
    %cst_24 = arith.constant dense<0.000000e+00> : vector<1x64xf32>
    %67 = tpu.matmul %66, %1, %cst_24 {dimension_numbers = #tpu.dot_dimension_numbers<[1], [0], [0], [1], [0, 0, 1, 1], [], []>} : vector<1x64xf32>, vector<64x64xf32>, vector<1x64xf32> -> vector<1x64xf32>
    %68 = arith.addf %67, %11 : vector<1x64xf32>
    %cst_25 = arith.constant 0.000000e+00 : f32
    %69 = vector.broadcast %cst_25 : f32 to vector<1x64xf32>
    %70 = arith.maximumf %68, %69 : vector<1x64xf32>
    %cst_26 = arith.constant dense<0.000000e+00> : vector<1x32xf32>
    %71 = tpu.matmul %70, %2, %cst_26 {dimension_numbers = #tpu.dot_dimension_numbers<[1], [0], [0], [1], [0, 0, 1, 1], [], []>} : vector<1x64xf32>, vector<64x32xf32>, vector<1x32xf32> -> vector<1x32xf32>
    %72 = arith.addf %71, %12 : vector<1x32xf32>
    %cst_27 = arith.constant 0.000000e+00 : f32
    %73 = vector.broadcast %cst_27 : f32 to vector<1x32xf32>
    %74 = arith.maximumf %72, %73 : vector<1x32xf32>
    %cst_28 = arith.constant dense<0.000000e+00> : vector<1x32xf32>
    %75 = tpu.matmul %74, %5, %cst_28 {dimension_numbers = #tpu.dot_dimension_numbers<[1], [0], [0], [1], [0, 0, 1, 1], [], []>} : vector<1x32xf32>, vector<32x32xf32>, vector<1x32xf32> -> vector<1x32xf32>
    %76 = arith.addf %75, %13 : vector<1x32xf32>
    %cst_29 = arith.constant 0.000000e+00 : f32
    %77 = vector.broadcast %cst_29 : f32 to vector<1x32xf32>
    %78 = arith.maximumf %76, %77 : vector<1x32xf32>
    %cst_30 = arith.constant dense<0.000000e+00> : vector<1x128xf32>
    %79 = tpu.matmul %78, %6, %cst_30 {dimension_numbers = #tpu.dot_dimension_numbers<[1], [0], [0], [1], [0, 0, 1, 1], [], []>} : vector<1x32xf32>, vector<32x128xf32>, vector<1x128xf32> -> vector<1x128xf32>
    %80 = arith.addf %79, %14 : vector<1x128xf32>
    %cst_31 = arith.constant 0.000000e+00 : f32
    %81 = vector.broadcast %cst_31 : f32 to vector<1x128xf32>
    %82 = arith.maximumf %80, %81 : vector<1x128xf32>
    %c0_32 = arith.constant 0 : index
    %c0_33 = arith.constant 0 : index
    %83 = vector.load %arg5[%c0_32, %c0_33] : memref<1x128xf32, #tpu.memory_space<vmem>>, vector<1x128xf32>
    tpu.vector_store %arg5[%c0_32, %c0_33], %82 {strides = array<i32>} : memref<1x128xf32, #tpu.memory_space<vmem>>, vector<1x128xf32>,
    return
  }
  func.func @transform_0(%arg0: i32, %arg1: memref<1xi32, #tpu.memory_space<smem>>, %arg2: memref<1xi32, #tpu.memory_space<smem>>) -> (i32, i32) {
    %c0_i32 = arith.constant 0 : i32
    %c0_i32_0 = arith.constant 0 : i32
    %c0_i32_1 = arith.constant 0 : i32
    return %c0_i32, %c0_i32_0 : i32, i32
  }
  func.func @transform_1(%arg0: i32, %arg1: memref<1xi32, #tpu.memory_space<smem>>, %arg2: memref<1xi32, #tpu.memory_space<smem>>) -> (i32, i32) {
    %c0_i32 = arith.constant 0 : i32
    %c0_i32_0 = arith.constant 0 : i32
    %c0_i32_1 = arith.constant 0 : i32
    return %c0_i32, %c0_i32_0 : i32, i32
  }
  func.func @transform_2(%arg0: i32, %arg1: memref<1xi32, #tpu.memory_space<smem>>, %arg2: memref<1xi32, #tpu.memory_space<smem>>) -> (i32, i32) {
    %c0_i32 = arith.constant 0 : i32
    %c0_i32_0 = arith.constant 0 : i32
    %c0_i32_1 = arith.constant 0 : i32
    return %c0_i32, %c0_i32_0 : i32, i32
  }
}

</mosaic_0001>

<llo_original>
// kernel: graph_action_network.1
$region0: #{graph_action_network.1}
  #allocation0 [shape = 'u32[]', space=smem, size = 0x4, offset = 0x4, fixed_abs, tag = 'smem constant byte address 0x4 - core index']
  #allocation1 [shape = 'u32[144,128]{1,0:T(1,128)}', space=vmem, size = 0x12000, scoped, tag = 'internal scratch']
  #allocation2 [shape = 's32[1]{0}', space=sflag, size = 0x4, scoped, tag = 'scoped memory for graph_action_network.1']
  #allocation3 [shape = 's32[1]{0:T(128)S(6)}', space=smem, size = 0x200, scoped, tag = 'prefetched SMEM operand 0']
  #allocation4 [shape = 's32[1]{0:T(128)S(6)}', space=smem, size = 0x200, scoped, tag = 'prefetched SMEM operand 1']
  %s0 = inlined_call_operand.<no memory space> [shape: s32[1], index: 0, kind: input, shape index: {}]
  %s1 = inlined_call_operand.<no memory space> [shape: s32[1], index: 1, kind: input, shape index: {}]
  %s2 = inlined_call_operand.hbm [shape: f32[16,16], index: 2, kind: input, shape index: {}]
  %s3 = inlined_call_operand.hbm [shape: f32[136,128], index: 3, kind: input, shape index: {}]
  %s4 = inlined_call_operand.vmem [shape: f32[1,128], index: 4, kind: output, shape index: {}]
  %s5 = sld [smem:[#allocation0]]
  $region26: #{graph_action_network.1} parent=0
    _
  %s7 = ssub.s32 1, %s5
  %s8 = scalar_select 0, %s7, %s5
  %9 = sst [smem:[#allocation3]] %s0
  %10 = sst [smem:[#allocation4]] %s1
  $region1: #{graph_action_network.1} parent=0
    #allocation5 [shape = 'u8[8192]{0}', space=vmem, size = 0x2000, scoped, tag = 'input window, operand 2, single buffered']
    #allocation6 [shape = 's32[1]{0}', space=sflag, size = 0x4, scoped, tag = 'scoped memory for graph_action_network.1']
    #allocation7 [shape = 'u8[69632]{0}', space=vmem, size = 0x11000, scoped, tag = 'input window, operand 3, single buffered']
    #allocation8 [shape = 's32[1]{0}', space=sflag, size = 0x4, scoped, tag = 'scoped memory for graph_action_network.1']
    %11 = vsyncpa [#allocation6], 0
    %12 = vsyncpa [#allocation8], 0
    // Predicated region
    $region2: #{graph_action_network.1} parent=1 // pred_check
      _
    $region3: #{graph_action_network.1} parent=1 // pred_check_branch
      %14 = sbr.rel (0) target = $region5
    $region4: #{graph_action_network.1} parent=1 // pred_region
      %s16 = ssub.s32 256, 256
      %17 = vsyncadd [#allocation6], %s16
      %s18 = sshll.u32 [#allocation5], 4
      %s19 = int_to_ptr.vmem [resolvable:$true] %s18
      %24 = dma.hbm_to_vmem [thread:$0]  %s2, 256, %s19, [#allocation6], 128, 128, 8
    $region5: #{graph_action_network.1} parent=1 // pred_fallthru
      _
    // Predicated region
    $region6: #{graph_action_network.1} parent=1 // pred_check
      _
    $region7: #{graph_action_network.1} parent=1 // pred_check_branch
      %26 = sbr.rel (0) target = $region9
    $region8: #{graph_action_network.1} parent=1 // pred_region
      %s28 = ssub.s32 2176, 2176
      %29 = vsyncadd [#allocation8], %s28
      %s30 = sshll.u32 [#allocation7], 4
      %s31 = int_to_ptr.vmem [resolvable:$true] %s30
      %36 = dma.hbm_to_vmem [thread:$0]  %s3, 2176, %s31, [#allocation8], 128, 128, 8
    $region9: #{graph_action_network.1} parent=1 // pred_fallthru
      _
    // Predicated region
    $region10: #{graph_action_network.1} parent=1 // pred_check
      _
    $region11: #{graph_action_network.1} parent=1 // pred_check_branch
      %38 = sbr.rel (0) target = $region13
    $region12: #{graph_action_network.1} parent=1 // pred_region
      %39 = dma.done [#allocation6], 256
    $region13: #{graph_action_network.1} parent=1 // pred_fallthru
      _
    // Predicated region
    $region14: #{graph_action_network.1} parent=1 // pred_check
      _
    $region15: #{graph_action_network.1} parent=1 // pred_check_branch
      %41 = sbr.rel (0) target = $region17
    $region16: #{graph_action_network.1} parent=1 // pred_region
      %42 = dma.done [#allocation8], 2176
    $region17: #{graph_action_network.1} parent=1 // pred_fallthru
      _
    %v43 = vld [vmem:[#allocation7] sm:$0xff]
    %v44 = vld [vmem:[#allocation7 + $0x8] sm:$0xff]
    %v45 = vld [vmem:[#allocation7 + $0x10] sm:$0xff]
    %v46 = vld [vmem:[#allocation7 + $0x18] sm:$0xff]
    %v47 = vld [vmem:[#allocation7 + $0x20] sm:$0xff]
    %v48 = vld [vmem:[#allocation7 + $0x28] sm:$0xff]
    %v49 = vld [vmem:[#allocation7 + $0x30] sm:$0xff]
    %v50 = vld [vmem:[#allocation7 + $0x38] sm:$0xff]
    %v51 = vld [vmem:[#allocation7 + $0x40] sm:$0xff]
    %v52 = vld [vmem:[#allocation7 + $0x48] sm:$0xff]
    %v53 = vld [vmem:[#allocation7 + $0x50] sm:$0xff]
    %v54 = vld [vmem:[#allocation7 + $0x58] sm:$0xff]
    %v55 = vld [vmem:[#allocation7 + $0x60] sm:$0xff]
    %v56 = vld [vmem:[#allocation7 + $0x68] sm:$0xff]
    %v57 = vld [vmem:[#allocation7 + $0x70] sm:$0xff]
    %v58 = vld [vmem:[#allocation7 + $0x78] sm:$0xff]
    %v59 = vld [vmem:[#allocation7 + $0x80] sm:$0x1]
    %v60 = vld [vmem:[#allocation7 + $0x81] sm:$0x1]
    %v61 = vld [vmem:[#allocation7 + $0x82] sm:$0x1]
    %v62 = vld [vmem:[#allocation7 + $0x83] sm:$0x1]
    %v63 = vld [vmem:[#allocation5] sm:$0xff]
    %v64 = vld [vmem:[#allocation5 + $0x8] sm:$0xff]
    %v65 = vlaneseq
    %v66 = vshrl.u32 %v65, 7
    %v67 = vadd.s32 %v66, 8
    %v68 = vlaneseq
    %v69 = vand.u32 %v68, 127
    %vm70 = vcmp.eq.s32.totalorder %v66, %v69
    %vm71 = vcmp.eq.s32.totalorder %v67, %v69
    %v72 = vsel %vm70, %v63, 0.0
    %v73 = vsel %vm71, %v64, 0.0
    %vm74 = vcmask 130048
    %v75 = vsel %vm74, %v72, 0.0
    %76 = vadd.xlane.f32.xlu0 %v75
    %v77 = vpop.xlane.xlu0 %76
    %v78 = vsel %vm74, %v73, 0.0
    %79 = vadd.xlane.f32.xlu0 %v78
    %v80 = vpop.xlane.xlu0 %79
    %v81 = vsel %vm70, 0.0, %v63
    %v82 = vsel %vm71, 0.0, %v64
    %v83 = vlaneseq
    %v84 = vshrl.u32 %v83, 7
    %v85 = vsub.s32 0, %v84
    %v86 = vrot.slane %v59, %v85
    %v87 = vmul.f32 %v77, %v86
    %v88 = vmul.f32 %v80, %v86
    %90 = vrot.lane.b32.xlu0 %v86, 64
    %v91 = vpop.permute.xlu0 %90
    %v94 = vsel %vm74, %v81, 0
    %v97 = vsel %vm74, %v82, 0
    %99 = vmatprep.subr.mxu0 0.0
    %100 = vmatpush1.msra.mxu0 %v87
    %101 = vmatprep.subr.mxu0 0.0
    %102 = vmatpush1.msra.mxu0 %v88
    %103 = vmatprep.subr.mxu0 0.0
    %104 = vmatpush1.msra.mxu0 0.0
    %105 = vmatprep.subr.mxu0 0.0
    %106 = vmatpush1.msra.mxu0 0.0
    %107 = vmatprep.subr.mxu0 0.0
    %108 = vmatpush1.msra.mxu0 0.0
    %109 = vmatprep.subr.mxu0 0.0
    %110 = vmatpush1.msra.mxu0 0.0
    %111 = vmatprep.subr.mxu0 0.0
    %112 = vmatpush1.msra.mxu0 0.0
    %113 = vmatprep.subr.mxu0 0.0
    %114 = vmatpush1.msra.mxu0 0.0
    %115 = vmatprep.subr.mxu0 0.0
    %116 = vmatpush1.msra.mxu0 0.0
    %117 = vmatprep.subr.mxu0 0.0
    %118 = vmatpush1.msra.mxu0 0.0
    %119 = vmatprep.subr.mxu0 0.0
    %120 = vmatpush1.msra.mxu0 0.0
    %121 = vmatprep.subr.mxu0 0.0
    %122 = vmatpush1.msra.mxu0 0.0
    %123 = vmatprep.subr.mxu0 0.0
    %124 = vmatpush1.msra.mxu0 0.0
    %125 = vmatprep.subr.mxu0 0.0
    %126 = vmatpush1.msra.mxu0 0.0
    %127 = vmatprep.subr.mxu0 0.0
    %128 = vmatpush1.msra.mxu0 0.0
    %129 = vmatprep.subr.mxu0 0.0
    %130 = vmatpush1.msra.mxu0 0.0
    %131 = vmatprep.subr.mxu0 0.0
    %132 = vmatpush1.msra.mxu0 0.0
    %133 = vmatprep.subr.mxu0 0.0
    %134 = vmatpush1.msra.mxu0 0.0
    %135 = vmatprep.subr.mxu0 0.0
    %136 = vmatpush1.msra.mxu0 0.0
    %137 = vmatprep.subr.mxu0 0.0
    %138 = vmatpush1.msra.mxu0 0.0
    %139 = vmatprep.subr.mxu0 0.0
    %140 = vmatpush1.msra.mxu0 0.0
    %141 = vmatprep.subr.mxu0 0.0
    %142 = vmatpush1.msra.mxu0 0.0
    %143 = vmatprep.subr.mxu0 0.0
    %144 = vmatpush1.msra.mxu0 0.0
    %145 = vmatprep.subr.mxu0 0.0
    %146 = vmatpush1.msra.mxu0 0.0
    %147 = vmatprep.subr.mxu0 0.0
    %148 = vmatpush1.msra.mxu0 0.0
    %149 = vmatprep.subr.mxu0 0.0
    %150 = vmatpush1.msra.mxu0 0.0
    %151 = vmatprep.subr.mxu0 0.0
    %152 = vmatpush1.msra.mxu0 0.0
    %153 = vmatprep.subr.mxu0 0.0
    %154 = vmatpush1.msra.mxu0 0.0
    %155 = vmatprep.subr.mxu0 0.0
    %156 = vmatpush1.msra.mxu0 0.0
    %157 = vmatprep.subr.mxu0 0.0
    %158 = vmatpush1.msra.mxu0 0.0
    %159 = vmatprep.subr.mxu0 0.0
    %160 = vmatpush1.msra.mxu0 0.0
    %161 = vmatprep.subr.mxu0 0.0
    %162 = vmatpush1.msra.mxu0 0.0
    %163 = vmatprep.mubr.f32.mxu0 0.0
    %164 = vmatmul.mubr.f32.gmra.mrb[0].mxu0 %v94
    %v165 = vpop.f32.mrb[0].mxu0
    %v166 = vadd.f32 %v91, %v165
    %v167 = vpop.f32.mrb[0].mxu0
    %168 = vmatprep.mubr.f32.mxu0 0.0
    %169 = vmatmul.mubr.f32.gmra.mrb[0].mxu0 %v97
    %v170 = vpop.f32.mrb[0].mxu0
    %v171 = vadd.f32 %v91, %v170
    %v172 = vpop.f32.mrb[0].mxu0
    %173 = vdwg.mxu0
    %v174 = vmax.f32 %v166, 0.0
    %v175 = vmax.f32 %v171, 0.0
    %184 = vrot.lane.b32.xlu0 %v43, 32
    %v185 = vpop.permute.xlu0 %184
    %186 = vrot.lane.b32.xlu0 %v44, 32
    %v187 = vpop.permute.xlu0 %186
    %188 = vrot.lane.b32.xlu0 %v45, 32
    %v189 = vpop.permute.xlu0 %188
    %190 = vrot.lane.b32.xlu0 %v46, 32
    %v191 = vpop.permute.xlu0 %190
    %192 = vrot.lane.b32.xlu0 %v47, 32
    %v193 = vpop.permute.xlu0 %192
    %194 = vrot.lane.b32.xlu0 %v48, 32
    %v195 = vpop.permute.xlu0 %194
    %196 = vrot.lane.b32.xlu0 %v49, 32
    %v197 = vpop.permute.xlu0 %196
    %198 = vrot.lane.b32.xlu0 %v50, 32
    %v199 = vpop.permute.xlu0 %198
    %vm208 = vcmask 523264
    %v210 = vsel %vm208, %v174, 0
    %v213 = vsel %vm208, %v175, 0
    %215 = vmatprep.subr.mxu0 0.0
    %216 = vmatpush1.msra.mxu0 %v185
    %217 = vmatprep.subr.mxu0 0.0
    %218 = vmatpush1.msra.mxu0 %v187
    %219 = vmatprep.subr.mxu0 0.0
    %220 = vmatpush1.msra.mxu0 %v189
    %221 = vmatprep.subr.mxu0 0.0
    %222 = vmatpush1.msra.mxu0 %v191
    %223 = vmatprep.subr.mxu0 0.0
    %224 = vmatpush1.msra.mxu0 %v193
    %225 = vmatprep.subr.mxu0 0.0
    %226 = vmatpush1.msra.mxu0 %v195
    %227 = vmatprep.subr.mxu0 0.0
    %228 = vmatpush1.msra.mxu0 %v197
    %229 = vmatprep.subr.mxu0 0.0
    %230 = vmatpush1.msra.mxu0 %v199
    %231 = vmatprep.subr.mxu0 0.0
    %232 = vmatpush1.msra.mxu0 0.0
    %233 = vmatprep.subr.mxu0 0.0
    %234 = vmatpush1.msra.mxu0 0.0
    %235 = vmatprep.subr.mxu0 0.0
    %236 = vmatpush1.msra.mxu0 0.0
    %237 = vmatprep.subr.mxu0 0.0
    %238 = vmatpush1.msra.mxu0 0.0
    %239 = vmatprep.subr.mxu0 0.0
    %240 = vmatpush1.msra.mxu0 0.0
    %241 = vmatprep.subr.mxu0 0.0
    %242 = vmatpush1.msra.mxu0 0.0
    %243 = vmatprep.subr.mxu0 0.0
    %244 = vmatpush1.msra.mxu0 0.0
    %245 = vmatprep.subr.mxu0 0.0
    %246 = vmatpush1.msra.mxu0 0.0
    %247 = vmatprep.subr.mxu0 0.0
    %248 = vmatpush1.msra.mxu0 0.0
    %249 = vmatprep.subr.mxu0 0.0
    %250 = vmatpush1.msra.mxu0 0.0
    %251 = vmatprep.subr.mxu0 0.0
    %252 = vmatpush1.msra.mxu0 0.0
    %253 = vmatprep.subr.mxu0 0.0
    %254 = vmatpush1.msra.mxu0 0.0
    %255 = vmatprep.subr.mxu0 0.0
    %256 = vmatpush1.msra.mxu0 0.0
    %257 = vmatprep.subr.mxu0 0.0
    %258 = vmatpush1.msra.mxu0 0.0
    %259 = vmatprep.subr.mxu0 0.0
    %260 = vmatpush1.msra.mxu0 0.0
    %261 = vmatprep.subr.mxu0 0.0
    %262 = vmatpush1.msra.mxu0 0.0
    %263 = vmatprep.subr.mxu0 0.0
    %264 = vmatpush1.msra.mxu0 0.0
    %265 = vmatprep.subr.mxu0 0.0
    %266 = vmatpush1.msra.mxu0 0.0
    %267 = vmatprep.subr.mxu0 0.0
    %268 = vmatpush1.msra.mxu0 0.0
    %269 = vmatprep.subr.mxu0 0.0
    %270 = vmatpush1.msra.mxu0 0.0
    %271 = vmatprep.subr.mxu0 0.0
    %272 = vmatpush1.msra.mxu0 0.0
    %273 = vmatprep.subr.mxu0 0.0
    %274 = vmatpush1.msra.mxu0 0.0
    %275 = vmatprep.subr.mxu0 0.0
    %276 = vmatpush1.msra.mxu0 0.0
    %277 = vmatprep.subr.mxu0 0.0
    %278 = vmatpush1.msra.mxu0 0.0
    %279 = vmatprep.mubr.f32.mxu0 0.0
    %280 = vmatmul.mubr.f32.gmra.mrb[0].mxu0 %v210
    %v281 = vpop.f32.mrb[0].mxu0
    %v282 = vadd.f32 0.0, %v281
    %v283 = vpop.f32.mrb[0].mxu0
    %284 = vmatprep.mubr.f32.mxu0 0.0
    %285 = vmatmul.mubr.f32.gmra.mrb[0].mxu0 %v213
    %v286 = vpop.f32.mrb[0].mxu0
    %v287 = vadd.f32 0.0, %v286
    %v288 = vpop.f32.mrb[0].mxu0
    %289 = vdwg.mxu0
    %v290 = vlaneseq
    %v291 = vshrl.u32 %v290, 7
    %v292 = vsub.s32 0, %v291
    %v293 = vrot.slane %v62, %v292
    %294 = vmatprep.subr.mxu0 0.0
    %295 = vmatpush1.msra.mxu0 %v282
    %296 = vmatprep.subr.mxu0 0.0
    %297 = vmatpush1.msra.mxu0 %v287
    %298 = vmatprep.subr.mxu0 0.0
    %299 = vmatpush1.msra.mxu0 0.0
    %300 = vmatprep.subr.mxu0 0.0
    %301 = vmatpush1.msra.mxu0 0.0
    %302 = vmatprep.subr.mxu0 0.0
    %303 = vmatpush1.msra.mxu0 0.0
    %304 = vmatprep.subr.mxu0 0.0
    %305 = vmatpush1.msra.mxu0 0.0
    %306 = vmatprep.subr.mxu0 0.0
    %307 = vmatpush1.msra.mxu0 0.0
    %308 = vmatprep.subr.mxu0 0.0
    %309 = vmatpush1.msra.mxu0 0.0
    %310 = vmatprep.subr.mxu0 0.0
    %311 = vmatpush1.msra.mxu0 0.0
    %312 = vmatprep.subr.mxu0 0.0
    %313 = vmatpush1.msra.mxu0 0.0
    %314 = vmatprep.subr.mxu0 0.0
    %315 = vmatpush1.msra.mxu0 0.0
    %316 = vmatprep.subr.mxu0 0.0
    %317 = vmatpush1.msra.mxu0 0.0
    %318 = vmatprep.subr.mxu0 0.0
    %319 = vmatpush1.msra.mxu0 0.0
    %320 = vmatprep.subr.mxu0 0.0
    %321 = vmatpush1.msra.mxu0 0.0
    %322 = vmatprep.subr.mxu0 0.0
    %323 = vmatpush1.msra.mxu0 0.0
    %324 = vmatprep.subr.mxu0 0.0
    %325 = vmatpush1.msra.mxu0 0.0
    %326 = vmatprep.subr.mxu0 0.0
    %327 = vmatpush1.msra.mxu0 0.0
    %328 = vmatprep.subr.mxu0 0.0
    %329 = vmatpush1.msra.mxu0 0.0
    %330 = vmatprep.subr.mxu0 0.0
    %331 = vmatpush1.msra.mxu0 0.0
    %332 = vmatprep.subr.mxu0 0.0
    %333 = vmatpush1.msra.mxu0 0.0
    %334 = vmatprep.subr.mxu0 0.0
    %335 = vmatpush1.msra.mxu0 0.0
    %336 = vmatprep.subr.mxu0 0.0
    %337 = vmatpush1.msra.mxu0 0.0
    %338 = vmatprep.subr.mxu0 0.0
    %339 = vmatpush1.msra.mxu0 0.0
    %340 = vmatprep.subr.mxu0 0.0
    %341 = vmatpush1.msra.mxu0 0.0
    %342 = vmatprep.subr.mxu0 0.0
    %343 = vmatpush1.msra.mxu0 0.0
    %344 = vmatprep.subr.mxu0 0.0
    %345 = vmatpush1.msra.mxu0 0.0
    %346 = vmatprep.subr.mxu0 0.0
    %347 = vmatpush1.msra.mxu0 0.0
    %348 = vmatprep.subr.mxu0 0.0
    %349 = vmatpush1.msra.mxu0 0.0
    %350 = vmatprep.subr.mxu0 0.0
    %351 = vmatpush1.msra.mxu0 0.0
    %352 = vmatprep.subr.mxu0 0.0
    %353 = vmatpush1.msra.mxu0 0.0
    %354 = vmatprep.subr.mxu0 0.0
    %355 = vmatpush1.msra.mxu0 0.0
    %356 = vmatprep.subr.mxu0 0.0
    %357 = vmatpush1.msra.mxu0 0.0
    %358 = vmatprep.mubr.f32.mxu0 0.0
    %359 = vmatmul.mubr.f32.gmra.mrb[0].mxu0 %v94
    %v360 = vpop.f32.mrb[0].mxu0
    %v361 = vadd.f32 %v293, %v360
    %v362 = vpop.f32.mrb[0].mxu0
    %363 = vmatprep.mubr.f32.mxu0 0.0
    %364 = vmatmul.mubr.f32.gmra.mrb[0].mxu0 %v97
    %v365 = vpop.f32.mrb[0].mxu0
    %v366 = vadd.f32 %v293, %v365
    %v367 = vpop.f32.mrb[0].mxu0
    %368 = vdwg.mxu0
    %v369 = vmax.f32 %v361, 0.0
    %v370 = vmax.f32 %v366, 0.0
    %v371 = vsel %vm74, %v369, -inf
    %372 = vmax.xlane.f32.xlu0 %v371
    %v373 = vpop.xlane.xlu0 %372
    %v374 = vsel %vm74, %v370, -inf
    %375 = vmax.xlane.f32.xlu0 %v374
    %v376 = vpop.xlane.xlu0 %375
    %v377 = vsub.f32 %v369, %v373
    %v378 = vsub.f32 %v370, %v376
    %v379 = vmul.f32 %v377, 1.442695
    %v380 = vpow.pop %v379
    %v381 = vmul.f32 %v378, 1.442695
    %v382 = vpow.pop %v381
    %v383 = vsel %vm74, %v380, 0.0
    %384 = vadd.xlane.f32.xlu0 %v383
    %v385 = vpop.xlane.xlu0 %384
    %v386 = vsel %vm74, %v382, 0.0
    %387 = vadd.xlane.f32.xlu0 %v386
    %v388 = vpop.xlane.xlu0 %387
    %v389 = vlog2.pop %v385
    %v390 = vmul.f32 %v389, 0.6931472
    %v391 = vlog2.pop %v388
    %v392 = vmul.f32 %v391, 0.6931472
    %v393 = vsub.f32 %v377, %v390
    %v394 = vsub.f32 %v378, %v392
    %s395 = sld [smem:[#allocation3]]
    %v396 = vstv %s395
    %vm397 = vcmp.eq.s32.totalorder %v69, %v396
    %v398 = vsel %vm397, 1, 0
    %v399 = vcvt.s32.f32 %v398
    %s400 = sld [smem:[#allocation4]]
    %v401 = vstv %s400
    %vm402 = vcmp.eq.s32.totalorder %v69, %v401
    %v403 = vsel %vm402, 1, 0
    %v404 = vcvt.s32.f32 %v403
    %v406 = vsel %vm74, %v399, 0
    %408 = vmatprep.subr.mxu0 0.0
    %409 = vmatpush1.msra.mxu0 %v63
    %410 = vmatprep.subr.mxu0 0.0
    %411 = vmatpush1.msra.mxu0 %v64
    %412 = vmatprep.subr.mxu0 0.0
    %413 = vmatpush1.msra.mxu0 0.0
    %414 = vmatprep.subr.mxu0 0.0
    %415 = vmatpush1.msra.mxu0 0.0
    %416 = vmatprep.subr.mxu0 0.0
    %417 = vmatpush1.msra.mxu0 0.0
    %418 = vmatprep.subr.mxu0 0.0
    %419 = vmatpush1.msra.mxu0 0.0
    %420 = vmatprep.subr.mxu0 0.0
    %421 = vmatpush1.msra.mxu0 0.0
    %422 = vmatprep.subr.mxu0 0.0
    %423 = vmatpush1.msra.mxu0 0.0
    %424 = vmatprep.subr.mxu0 0.0
    %425 = vmatpush1.msra.mxu0 0.0
    %426 = vmatprep.subr.mxu0 0.0
    %427 = vmatpush1.msra.mxu0 0.0
    %428 = vmatprep.subr.mxu0 0.0
    %429 = vmatpush1.msra.mxu0 0.0
    %430 = vmatprep.subr.mxu0 0.0
    %431 = vmatpush1.msra.mxu0 0.0
    %432 = vmatprep.subr.mxu0 0.0
    %433 = vmatpush1.msra.mxu0 0.0
    %434 = vmatprep.subr.mxu0 0.0
    %435 = vmatpush1.msra.mxu0 0.0
    %436 = vmatprep.subr.mxu0 0.0
    %437 = vmatpush1.msra.mxu0 0.0
    %438 = vmatprep.subr.mxu0 0.0
    %439 = vmatpush1.msra.mxu0 0.0
    %440 = vmatprep.subr.mxu0 0.0
    %441 = vmatpush1.msra.mxu0 0.0
    %442 = vmatprep.subr.mxu0 0.0
    %443 = vmatpush1.msra.mxu0 0.0
    %444 = vmatprep.subr.mxu0 0.0
    %445 = vmatpush1.msra.mxu0 0.0
    %446 = vmatprep.subr.mxu0 0.0
    %447 = vmatpush1.msra.mxu0 0.0
    %448 = vmatprep.subr.mxu0 0.0
    %449 = vmatpush1.msra.mxu0 0.0
    %450 = vmatprep.subr.mxu0 0.0
    %451 = vmatpush1.msra.mxu0 0.0
    %452 = vmatprep.subr.mxu0 0.0
    %453 = vmatpush1.msra.mxu0 0.0
    %454 = vmatprep.subr.mxu0 0.0
    %455 = vmatpush1.msra.mxu0 0.0
    %456 = vmatprep.subr.mxu0 0.0
    %457 = vmatpush1.msra.mxu0 0.0
    %458 = vmatprep.subr.mxu0 0.0
    %459 = vmatpush1.msra.mxu0 0.0
    %460 = vmatprep.subr.mxu0 0.0
    %461 = vmatpush1.msra.mxu0 0.0
    %462 = vmatprep.subr.mxu0 0.0
    %463 = vmatpush1.msra.mxu0 0.0
    %464 = vmatprep.subr.mxu0 0.0
    %465 = vmatpush1.msra.mxu0 0.0
    %466 = vmatprep.subr.mxu0 0.0
    %467 = vmatpush1.msra.mxu0 0.0
    %468 = vmatprep.subr.mxu0 0.0
    %469 = vmatpush1.msra.mxu0 0.0
    %470 = vmatprep.subr.mxu0 0.0
    %471 = vmatpush1.msra.mxu0 0.0
    %472 = vmatprep.mubr.f32.mxu0 0.0
    %473 = vmatmul.mubr.f32.gmra.mrb[0].mxu0 %v406
    %v474 = vpop.f32.mrb[0].mxu0
    %v475 = vadd.f32 0.0, %v474
    %v476 = vpop.f32.mrb[0].mxu0
    %477 = vdwg.mxu0
    %v479 = vsel %vm74, %v404, 0
    %481 = vmatprep.subr.mxu0 0.0
    %482 = vmatpush1.msra.mxu0 %v63
    %483 = vmatprep.subr.mxu0 0.0
    %484 = vmatpush1.msra.mxu0 %v64
    %485 = vmatprep.subr.mxu0 0.0
    %486 = vmatpush1.msra.mxu0 0.0
    %487 = vmatprep.subr.mxu0 0.0
    %488 = vmatpush1.msra.mxu0 0.0
    %489 = vmatprep.subr.mxu0 0.0
    %490 = vmatpush1.msra.mxu0 0.0
    %491 = vmatprep.subr.mxu0 0.0
    %492 = vmatpush1.msra.mxu0 0.0
    %493 = vmatprep.subr.mxu0 0.0
    %494 = vmatpush1.msra.mxu0 0.0
    %495 = vmatprep.subr.mxu0 0.0
    %496 = vmatpush1.msra.mxu0 0.0
    %497 = vmatprep.subr.mxu0 0.0
    %498 = vmatpush1.msra.mxu0 0.0
    %499 = vmatprep.subr.mxu0 0.0
    %500 = vmatpush1.msra.mxu0 0.0
    %501 = vmatprep.subr.mxu0 0.0
    %502 = vmatpush1.msra.mxu0 0.0
    %503 = vmatprep.subr.mxu0 0.0
    %504 = vmatpush1.msra.mxu0 0.0
    %505 = vmatprep.subr.mxu0 0.0
    %506 = vmatpush1.msra.mxu0 0.0
    %507 = vmatprep.subr.mxu0 0.0
    %508 = vmatpush1.msra.mxu0 0.0
    %509 = vmatprep.subr.mxu0 0.0
    %510 = vmatpush1.msra.mxu0 0.0
    %511 = vmatprep.subr.mxu0 0.0
    %512 = vmatpush1.msra.mxu0 0.0
    %513 = vmatprep.subr.mxu0 0.0
    %514 = vmatpush1.msra.mxu0 0.0
    %515 = vmatprep.subr.mxu0 0.0
    %516 = vmatpush1.msra.mxu0 0.0
    %517 = vmatprep.subr.mxu0 0.0
    %518 = vmatpush1.msra.mxu0 0.0
    %519 = vmatprep.subr.mxu0 0.0
    %520 = vmatpush1.msra.mxu0 0.0
    %521 = vmatprep.subr.mxu0 0.0
    %522 = vmatpush1.msra.mxu0 0.0
    %523 = vmatprep.subr.mxu0 0.0
    %524 = vmatpush1.msra.mxu0 0.0
    %525 = vmatprep.subr.mxu0 0.0
    %526 = vmatpush1.msra.mxu0 0.0
    %527 = vmatprep.subr.mxu0 0.0
    %528 = vmatpush1.msra.mxu0 0.0
    %529 = vmatprep.subr.mxu0 0.0
    %530 = vmatpush1.msra.mxu0 0.0
    %531 = vmatprep.subr.mxu0 0.0
    %532 = vmatpush1.msra.mxu0 0.0
    %533 = vmatprep.subr.mxu0 0.0
    %534 = vmatpush1.msra.mxu0 0.0
    %535 = vmatprep.subr.mxu0 0.0
    %536 = vmatpush1.msra.mxu0 0.0
    %537 = vmatprep.subr.mxu0 0.0
    %538 = vmatpush1.msra.mxu0 0.0
    %539 = vmatprep.subr.mxu0 0.0
    %540 = vmatpush1.msra.mxu0 0.0
    %541 = vmatprep.subr.mxu0 0.0
    %542 = vmatpush1.msra.mxu0 0.0
    %543 = vmatprep.subr.mxu0 0.0
    %544 = vmatpush1.msra.mxu0 0.0
    %545 = vmatprep.mubr.f32.mxu0 0.0
    %546 = vmatmul.mubr.f32.gmra.mrb[0].mxu0 %v479
    %v547 = vpop.f32.mrb[0].mxu0
    %v548 = vadd.f32 0.0, %v547
    %v549 = vpop.f32.mrb[0].mxu0
    %550 = vdwg.mxu0
    %551 = vmatprep.subr.mxu0 0.0
    %552 = vmatpush1.msra.mxu0 %v393
    %553 = vmatprep.subr.mxu0 0.0
    %554 = vmatpush1.msra.mxu0 %v394
    %555 = vmatprep.subr.mxu0 0.0
    %556 = vmatpush1.msra.mxu0 0.0
    %557 = vmatprep.subr.mxu0 0.0
    %558 = vmatpush1.msra.mxu0 0.0
    %559 = vmatprep.subr.mxu0 0.0
    %560 = vmatpush1.msra.mxu0 0.0
    %561 = vmatprep.subr.mxu0 0.0
    %562 = vmatpush1.msra.mxu0 0.0
    %563 = vmatprep.subr.mxu0 0.0
    %564 = vmatpush1.msra.mxu0 0.0
    %565 = vmatprep.subr.mxu0 0.0
    %566 = vmatpush1.msra.mxu0 0.0
    %567 = vmatprep.subr.mxu0 0.0
    %568 = vmatpush1.msra.mxu0 0.0
    %569 = vmatprep.subr.mxu0 0.0
    %570 = vmatpush1.msra.mxu0 0.0
    %571 = vmatprep.subr.mxu0 0.0
    %572 = vmatpush1.msra.mxu0 0.0
    %573 = vmatprep.subr.mxu0 0.0
    %574 = vmatpush1.msra.mxu0 0.0
    %575 = vmatprep.subr.mxu0 0.0
    %576 = vmatpush1.msra.mxu0 0.0
    %577 = vmatprep.subr.mxu0 0.0
    %578 = vmatpush1.msra.mxu0 0.0
    %579 = vmatprep.subr.mxu0 0.0
    %580 = vmatpush1.msra.mxu0 0.0
    %581 = vmatprep.subr.mxu0 0.0
    %582 = vmatpush1.msra.mxu0 0.0
    %583 = vmatprep.subr.mxu0 0.0
    %584 = vmatpush1.msra.mxu0 0.0
    %585 = vmatprep.subr.mxu0 0.0
    %586 = vmatpush1.msra.mxu0 0.0
    %587 = vmatprep.subr.mxu0 0.0
    %588 = vmatpush1.msra.mxu0 0.0
    %589 = vmatprep.subr.mxu0 0.0
    %590 = vmatpush1.msra.mxu0 0.0
    %591 = vmatprep.subr.mxu0 0.0
    %592 = vmatpush1.msra.mxu0 0.0
    %593 = vmatprep.subr.mxu0 0.0
    %594 = vmatpush1.msra.mxu0 0.0
    %595 = vmatprep.subr.mxu0 0.0
    %596 = vmatpush1.msra.mxu0 0.0
    %597 = vmatprep.subr.mxu0 0.0
    %598 = vmatpush1.msra.mxu0 0.0
    %599 = vmatprep.subr.mxu0 0.0
    %600 = vmatpush1.msra.mxu0 0.0
    %601 = vmatprep.subr.mxu0 0.0
    %602 = vmatpush1.msra.mxu0 0.0
    %603 = vmatprep.subr.mxu0 0.0
    %604 = vmatpush1.msra.mxu0 0.0
    %605 = vmatprep.subr.mxu0 0.0
    %606 = vmatpush1.msra.mxu0 0.0
    %607 = vmatprep.subr.mxu0 0.0
    %608 = vmatpush1.msra.mxu0 0.0
    %609 = vmatprep.subr.mxu0 0.0
    %610 = vmatpush1.msra.mxu0 0.0
    %611 = vmatprep.subr.mxu0 0.0
    %612 = vmatpush1.msra.mxu0 0.0
    %613 = vmatprep.subr.mxu0 0.0
    %614 = vmatpush1.msra.mxu0 0.0
    %615 = vmatprep.mubr.f32.mxu0 0.0
    %616 = vmatmul.mubr.f32.gmra.mrb[0].mxu0 %v406
    %v617 = vpop.f32.mrb[0].mxu0
    %v618 = vadd.f32 0.0, %v617
    %v619 = vpop.f32.mrb[0].mxu0
    %620 = vdwg.mxu0
    %621 = vmatprep.subr.mxu0 0.0
    %622 = vmatpush1.msra.mxu0 %v393
    %623 = vmatprep.subr.mxu0 0.0
    %624 = vmatpush1.msra.mxu0 %v394
    %625 = vmatprep.subr.mxu0 0.0
    %626 = vmatpush1.msra.mxu0 0.0
    %627 = vmatprep.subr.mxu0 0.0
    %628 = vmatpush1.msra.mxu0 0.0
    %629 = vmatprep.subr.mxu0 0.0
    %630 = vmatpush1.msra.mxu0 0.0
    %631 = vmatprep.subr.mxu0 0.0
    %632 = vmatpush1.msra.mxu0 0.0
    %633 = vmatprep.subr.mxu0 0.0
    %634 = vmatpush1.msra.mxu0 0.0
    %635 = vmatprep.subr.mxu0 0.0
    %636 = vmatpush1.msra.mxu0 0.0
    %637 = vmatprep.subr.mxu0 0.0
    %638 = vmatpush1.msra.mxu0 0.0
    %639 = vmatprep.subr.mxu0 0.0
    %640 = vmatpush1.msra.mxu0 0.0
    %641 = vmatprep.subr.mxu0 0.0
    %642 = vmatpush1.msra.mxu0 0.0
    %643 = vmatprep.subr.mxu0 0.0
    %644 = vmatpush1.msra.mxu0 0.0
    %645 = vmatprep.subr.mxu0 0.0
    %646 = vmatpush1.msra.mxu0 0.0
    %647 = vmatprep.subr.mxu0 0.0
    %648 = vmatpush1.msra.mxu0 0.0
    %649 = vmatprep.subr.mxu0 0.0
    %650 = vmatpush1.msra.mxu0 0.0
    %651 = vmatprep.subr.mxu0 0.0
    %652 = vmatpush1.msra.mxu0 0.0
    %653 = vmatprep.subr.mxu0 0.0
    %654 = vmatpush1.msra.mxu0 0.0
    %655 = vmatprep.subr.mxu0 0.0
    %656 = vmatpush1.msra.mxu0 0.0
    %657 = vmatprep.subr.mxu0 0.0
    %658 = vmatpush1.msra.mxu0 0.0
    %659 = vmatprep.subr.mxu0 0.0
    %660 = vmatpush1.msra.mxu0 0.0
    %661 = vmatprep.subr.mxu0 0.0
    %662 = vmatpush1.msra.mxu0 0.0
    %663 = vmatprep.subr.mxu0 0.0
    %664 = vmatpush1.msra.mxu0 0.0
    %665 = vmatprep.subr.mxu0 0.0
    %666 = vmatpush1.msra.mxu0 0.0
    %667 = vmatprep.subr.mxu0 0.0
    %668 = vmatpush1.msra.mxu0 0.0
    %669 = vmatprep.subr.mxu0 0.0
    %670 = vmatpush1.msra.mxu0 0.0
    %671 = vmatprep.subr.mxu0 0.0
    %672 = vmatpush1.msra.mxu0 0.0
    %673 = vmatprep.subr.mxu0 0.0
    %674 = vmatpush1.msra.mxu0 0.0
    %675 = vmatprep.subr.mxu0 0.0
    %676 = vmatpush1.msra.mxu0 0.0
    %677 = vmatprep.subr.mxu0 0.0
    %678 = vmatpush1.msra.mxu0 0.0
    %679 = vmatprep.subr.mxu0 0.0
    %680 = vmatpush1.msra.mxu0 0.0
    %681 = vmatprep.subr.mxu0 0.0
    %682 = vmatpush1.msra.mxu0 0.0
    %683 = vmatprep.subr.mxu0 0.0
    %684 = vmatpush1.msra.mxu0 0.0
    %685 = vmatprep.mubr.f32.mxu0 0.0
    %686 = vmatmul.mubr.f32.gmra.mrb[0].mxu0 %v479
    %v687 = vpop.f32.mrb[0].mxu0
    %v688 = vadd.f32 0.0, %v687
    %v689 = vpop.f32.mrb[0].mxu0
    %690 = vdwg.mxu0
    %692 = vrot.lane.b32.xlu0 %v548, 16
    %v693 = vpop.permute.xlu0 %692
    %696 = vrot.lane.b32.xlu0 %v618, 32
    %v697 = vpop.permute.xlu0 %696
    %700 = vrot.lane.b32.xlu0 %v688, 48
    %v701 = vpop.permute.xlu0 %700
    %v703 = vsel %vm74, %v475, %v693
    %vm704 = vcmask 261120
    %v705 = vsel %vm704, %v703, %v697
    %vm706 = vcmask 392192
    %v707 = vsel %vm706, %v705, %v701
    %v709 = vsel %vm208, %v707, 0
    %711 = vmatprep.subr.mxu0 0.0
    %712 = vmatpush1.msra.mxu0 %v43
    %713 = vmatprep.subr.mxu0 0.0
    %714 = vmatpush1.msra.mxu0 %v44
    %715 = vmatprep.subr.mxu0 0.0
    %716 = vmatpush1.msra.mxu0 %v45
    %717 = vmatprep.subr.mxu0 0.0
    %718 = vmatpush1.msra.mxu0 %v46
    %719 = vmatprep.subr.mxu0 0.0
    %720 = vmatpush1.msra.mxu0 %v47
    %721 = vmatprep.subr.mxu0 0.0
    %722 = vmatpush1.msra.mxu0 %v48
    %723 = vmatprep.subr.mxu0 0.0
    %724 = vmatpush1.msra.mxu0 %v49
    %725 = vmatprep.subr.mxu0 0.0
    %726 = vmatpush1.msra.mxu0 %v50
    %727 = vmatprep.subr.mxu0 0.0
    %728 = vmatpush1.msra.mxu0 0.0
    %729 = vmatprep.subr.mxu0 0.0
    %730 = vmatpush1.msra.mxu0 0.0
    %731 = vmatprep.subr.mxu0 0.0
    %732 = vmatpush1.msra.mxu0 0.0
    %733 = vmatprep.subr.mxu0 0.0
    %734 = vmatpush1.msra.mxu0 0.0
    %735 = vmatprep.subr.mxu0 0.0
    %736 = vmatpush1.msra.mxu0 0.0
    %737 = vmatprep.subr.mxu0 0.0
    %738 = vmatpush1.msra.mxu0 0.0
    %739 = vmatprep.subr.mxu0 0.0
    %740 = vmatpush1.msra.mxu0 0.0
    %741 = vmatprep.subr.mxu0 0.0
    %742 = vmatpush1.msra.mxu0 0.0
    %743 = vmatprep.subr.mxu0 0.0
    %744 = vmatpush1.msra.mxu0 0.0
    %745 = vmatprep.subr.mxu0 0.0
    %746 = vmatpush1.msra.mxu0 0.0
    %747 = vmatprep.subr.mxu0 0.0
    %748 = vmatpush1.msra.mxu0 0.0
    %749 = vmatprep.subr.mxu0 0.0
    %750 = vmatpush1.msra.mxu0 0.0
    %751 = vmatprep.subr.mxu0 0.0
    %752 = vmatpush1.msra.mxu0 0.0
    %753 = vmatprep.subr.mxu0 0.0
    %754 = vmatpush1.msra.mxu0 0.0
    %755 = vmatprep.subr.mxu0 0.0
    %756 = vmatpush1.msra.mxu0 0.0
    %757 = vmatprep.subr.mxu0 0.0
    %758 = vmatpush1.msra.mxu0 0.0
    %759 = vmatprep.subr.mxu0 0.0
    %760 = vmatpush1.msra.mxu0 0.0
    %761 = vmatprep.subr.mxu0 0.0
    %762 = vmatpush1.msra.mxu0 0.0
    %763 = vmatprep.subr.mxu0 0.0
    %764 = vmatpush1.msra.mxu0 0.0
    %765 = vmatprep.subr.mxu0 0.0
    %766 = vmatpush1.msra.mxu0 0.0
    %767 = vmatprep.subr.mxu0 0.0
    %768 = vmatpush1.msra.mxu0 0.0
    %769 = vmatprep.subr.mxu0 0.0
    %770 = vmatpush1.msra.mxu0 0.0
    %771 = vmatprep.subr.mxu0 0.0
    %772 = vmatpush1.msra.mxu0 0.0
    %773 = vmatprep.subr.mxu0 0.0
    %774 = vmatpush1.msra.mxu0 0.0
    %775 = vmatprep.mubr.f32.mxu0 0.0
    %776 = vmatmul.mubr.f32.gmra.mrb[0].mxu0 %v709
    %v777 = vpop.f32.mrb[0].mxu0
    %v778 = vadd.f32 %v60, %v777
    %v779 = vpop.f32.mrb[0].mxu0
    %780 = vdwg.mxu0
    %v781 = vmax.f32 %v778, 0.0
    %782 = vrot.lane.b32.xlu0 %v43, 64
    %v783 = vpop.permute.xlu0 %782
    %784 = vrot.lane.b32.xlu0 %v44, 64
    %v785 = vpop.permute.xlu0 %784
    %786 = vrot.lane.b32.xlu0 %v45, 64
    %v787 = vpop.permute.xlu0 %786
    %788 = vrot.lane.b32.xlu0 %v46, 64
    %v789 = vpop.permute.xlu0 %788
    %790 = vrot.lane.b32.xlu0 %v47, 64
    %v791 = vpop.permute.xlu0 %790
    %792 = vrot.lane.b32.xlu0 %v48, 64
    %v793 = vpop.permute.xlu0 %792
    %794 = vrot.lane.b32.xlu0 %v49, 64
    %v795 = vpop.permute.xlu0 %794
    %796 = vrot.lane.b32.xlu0 %v50, 64
    %v797 = vpop.permute.xlu0 %796
    %807 = vrot.lane.b32.xlu0 %v60, 64
    %v808 = vpop.permute.xlu0 %807
    %v811 = vsel %vm208, %v781, 0
    %813 = vmatprep.subr.mxu0 0.0
    %814 = vmatpush1.msra.mxu0 %v783
    %815 = vmatprep.subr.mxu0 0.0
    %816 = vmatpush1.msra.mxu0 %v785
    %817 = vmatprep.subr.mxu0 0.0
    %818 = vmatpush1.msra.mxu0 %v787
    %819 = vmatprep.subr.mxu0 0.0
    %820 = vmatpush1.msra.mxu0 %v789
    %821 = vmatprep.subr.mxu0 0.0
    %822 = vmatpush1.msra.mxu0 %v791
    %823 = vmatprep.subr.mxu0 0.0
    %824 = vmatpush1.msra.mxu0 %v793
    %825 = vmatprep.subr.mxu0 0.0
    %826 = vmatpush1.msra.mxu0 %v795
    %827 = vmatprep.subr.mxu0 0.0
    %828 = vmatpush1.msra.mxu0 %v797
    %829 = vmatprep.subr.mxu0 0.0
    %830 = vmatpush1.msra.mxu0 0.0
    %831 = vmatprep.subr.mxu0 0.0
    %832 = vmatpush1.msra.mxu0 0.0
    %833 = vmatprep.subr.mxu0 0.0
    %834 = vmatpush1.msra.mxu0 0.0
    %835 = vmatprep.subr.mxu0 0.0
    %836 = vmatpush1.msra.mxu0 0.0
    %837 = vmatprep.subr.mxu0 0.0
    %838 = vmatpush1.msra.mxu0 0.0
    %839 = vmatprep.subr.mxu0 0.0
    %840 = vmatpush1.msra.mxu0 0.0
    %841 = vmatprep.subr.mxu0 0.0
    %842 = vmatpush1.msra.mxu0 0.0
    %843 = vmatprep.subr.mxu0 0.0
    %844 = vmatpush1.msra.mxu0 0.0
    %845 = vmatprep.subr.mxu0 0.0
    %846 = vmatpush1.msra.mxu0 0.0
    %847 = vmatprep.subr.mxu0 0.0
    %848 = vmatpush1.msra.mxu0 0.0
    %849 = vmatprep.subr.mxu0 0.0
    %850 = vmatpush1.msra.mxu0 0.0
    %851 = vmatprep.subr.mxu0 0.0
    %852 = vmatpush1.msra.mxu0 0.0
    %853 = vmatprep.subr.mxu0 0.0
    %854 = vmatpush1.msra.mxu0 0.0
    %855 = vmatprep.subr.mxu0 0.0
    %856 = vmatpush1.msra.mxu0 0.0
    %857 = vmatprep.subr.mxu0 0.0
    %858 = vmatpush1.msra.mxu0 0.0
    %859 = vmatprep.subr.mxu0 0.0
    %860 = vmatpush1.msra.mxu0 0.0
    %861 = vmatprep.subr.mxu0 0.0
    %862 = vmatpush1.msra.mxu0 0.0
    %863 = vmatprep.subr.mxu0 0.0
    %864 = vmatpush1.msra.mxu0 0.0
    %865 = vmatprep.subr.mxu0 0.0
    %866 = vmatpush1.msra.mxu0 0.0
    %867 = vmatprep.subr.mxu0 0.0
    %868 = vmatpush1.msra.mxu0 0.0
    %869 = vmatprep.subr.mxu0 0.0
    %870 = vmatpush1.msra.mxu0 0.0
    %871 = vmatprep.subr.mxu0 0.0
    %872 = vmatpush1.msra.mxu0 0.0
    %873 = vmatprep.subr.mxu0 0.0
    %874 = vmatpush1.msra.mxu0 0.0
    %875 = vmatprep.subr.mxu0 0.0
    %876 = vmatpush1.msra.mxu0 0.0
    %877 = vmatprep.mubr.f32.mxu0 0.0
    %878 = vmatmul.mubr.f32.gmra.mrb[0].mxu0 %v811
    %v879 = vpop.f32.mrb[0].mxu0
    %v880 = vadd.f32 %v808, %v879
    %v881 = vpop.f32.mrb[0].mxu0
    %882 = vdwg.mxu0
    %v883 = vmax.f32 %v880, 0.0
    %884 = vrot.lane.b32.xlu0 %v60, 32
    %v885 = vpop.permute.xlu0 %884
    %v888 = vsel %vm704, %v883, 0
    %890 = vmatprep.subr.mxu0 0.0
    %891 = vmatpush1.msra.mxu0 %v51
    %892 = vmatprep.subr.mxu0 0.0
    %893 = vmatpush1.msra.mxu0 %v52
    %894 = vmatprep.subr.mxu0 0.0
    %895 = vmatpush1.msra.mxu0 %v53
    %896 = vmatprep.subr.mxu0 0.0
    %897 = vmatpush1.msra.mxu0 %v54
    %898 = vmatprep.subr.mxu0 0.0
    %899 = vmatpush1.msra.mxu0 0.0
    %900 = vmatprep.subr.mxu0 0.0
    %901 = vmatpush1.msra.mxu0 0.0
    %902 = vmatprep.subr.mxu0 0.0
    %903 = vmatpush1.msra.mxu0 0.0
    %904 = vmatprep.subr.mxu0 0.0
    %905 = vmatpush1.msra.mxu0 0.0
    %906 = vmatprep.subr.mxu0 0.0
    %907 = vmatpush1.msra.mxu0 0.0
    %908 = vmatprep.subr.mxu0 0.0
    %909 = vmatpush1.msra.mxu0 0.0
    %910 = vmatprep.subr.mxu0 0.0
    %911 = vmatpush1.msra.mxu0 0.0
    %912 = vmatprep.subr.mxu0 0.0
    %913 = vmatpush1.msra.mxu0 0.0
    %914 = vmatprep.subr.mxu0 0.0
    %915 = vmatpush1.msra.mxu0 0.0
    %916 = vmatprep.subr.mxu0 0.0
    %917 = vmatpush1.msra.mxu0 0.0
    %918 = vmatprep.subr.mxu0 0.0
    %919 = vmatpush1.msra.mxu0 0.0
    %920 = vmatprep.subr.mxu0 0.0
    %921 = vmatpush1.msra.mxu0 0.0
    %922 = vmatprep.subr.mxu0 0.0
    %923 = vmatpush1.msra.mxu0 0.0
    %924 = vmatprep.subr.mxu0 0.0
    %925 = vmatpush1.msra.mxu0 0.0
    %926 = vmatprep.subr.mxu0 0.0
    %927 = vmatpush1.msra.mxu0 0.0
    %928 = vmatprep.subr.mxu0 0.0
    %929 = vmatpush1.msra.mxu0 0.0
    %930 = vmatprep.subr.mxu0 0.0
    %931 = vmatpush1.msra.mxu0 0.0
    %932 = vmatprep.subr.mxu0 0.0
    %933 = vmatpush1.msra.mxu0 0.0
    %934 = vmatprep.subr.mxu0 0.0
    %935 = vmatpush1.msra.mxu0 0.0
    %936 = vmatprep.subr.mxu0 0.0
    %937 = vmatpush1.msra.mxu0 0.0
    %938 = vmatprep.subr.mxu0 0.0
    %939 = vmatpush1.msra.mxu0 0.0
    %940 = vmatprep.subr.mxu0 0.0
    %941 = vmatpush1.msra.mxu0 0.0
    %942 = vmatprep.subr.mxu0 0.0
    %943 = vmatpush1.msra.mxu0 0.0
    %944 = vmatprep.subr.mxu0 0.0
    %945 = vmatpush1.msra.mxu0 0.0
    %946 = vmatprep.subr.mxu0 0.0
    %947 = vmatpush1.msra.mxu0 0.0
    %948 = vmatprep.subr.mxu0 0.0
    %949 = vmatpush1.msra.mxu0 0.0
    %950 = vmatprep.subr.mxu0 0.0
    %951 = vmatpush1.msra.mxu0 0.0
    %952 = vmatprep.subr.mxu0 0.0
    %953 = vmatpush1.msra.mxu0 0.0
    %954 = vmatprep.mubr.f32.mxu0 0.0
    %955 = vmatmul.mubr.f32.gmra.mrb[0].mxu0 %v888
    %v956 = vpop.f32.mrb[0].mxu0
    %v957 = vadd.f32 %v885, %v956
    %v958 = vpop.f32.mrb[0].mxu0
    %959 = vdwg.mxu0
    %v960 = vmax.f32 %v957, 0.0
    %v962 = vsel %vm704, %v960, 0
    %964 = vmatprep.subr.mxu0 0.0
    %965 = vmatpush1.msra.mxu0 %v55
    %966 = vmatprep.subr.mxu0 0.0
    %967 = vmatpush1.msra.mxu0 %v56
    %968 = vmatprep.subr.mxu0 0.0
    %969 = vmatpush1.msra.mxu0 %v57
    %970 = vmatprep.subr.mxu0 0.0
    %971 = vmatpush1.msra.mxu0 %v58
    %972 = vmatprep.subr.mxu0 0.0
    %973 = vmatpush1.msra.mxu0 0.0
    %974 = vmatprep.subr.mxu0 0.0
    %975 = vmatpush1.msra.mxu0 0.0
    %976 = vmatprep.subr.mxu0 0.0
    %977 = vmatpush1.msra.mxu0 0.0
    %978 = vmatprep.subr.mxu0 0.0
    %979 = vmatpush1.msra.mxu0 0.0
    %980 = vmatprep.subr.mxu0 0.0
    %981 = vmatpush1.msra.mxu0 0.0
    %982 = vmatprep.subr.mxu0 0.0
    %983 = vmatpush1.msra.mxu0 0.0
    %984 = vmatprep.subr.mxu0 0.0
    %985 = vmatpush1.msra.mxu0 0.0
    %986 = vmatprep.subr.mxu0 0.0
    %987 = vmatpush1.msra.mxu0 0.0
    %988 = vmatprep.subr.mxu0 0.0
    %989 = vmatpush1.msra.mxu0 0.0
    %990 = vmatprep.subr.mxu0 0.0
    %991 = vmatpush1.msra.mxu0 0.0
    %992 = vmatprep.subr.mxu0 0.0
    %993 = vmatpush1.msra.mxu0 0.0
    %994 = vmatprep.subr.mxu0 0.0
    %995 = vmatpush1.msra.mxu0 0.0
    %996 = vmatprep.subr.mxu0 0.0
    %997 = vmatpush1.msra.mxu0 0.0
    %998 = vmatprep.subr.mxu0 0.0
    %999 = vmatpush1.msra.mxu0 0.0
    %1000 = vmatprep.subr.mxu0 0.0
    %1001 = vmatpush1.msra.mxu0 0.0
    %1002 = vmatprep.subr.mxu0 0.0
    %1003 = vmatpush1.msra.mxu0 0.0
    %1004 = vmatprep.subr.mxu0 0.0
    %1005 = vmatpush1.msra.mxu0 0.0
    %1006 = vmatprep.subr.mxu0 0.0
    %1007 = vmatpush1.msra.mxu0 0.0
    %1008 = vmatprep.subr.mxu0 0.0
    %1009 = vmatpush1.msra.mxu0 0.0
    %1010 = vmatprep.subr.mxu0 0.0
    %1011 = vmatpush1.msra.mxu0 0.0
    %1012 = vmatprep.subr.mxu0 0.0
    %1013 = vmatpush1.msra.mxu0 0.0
    %1014 = vmatprep.subr.mxu0 0.0
    %1015 = vmatpush1.msra.mxu0 0.0
    %1016 = vmatprep.subr.mxu0 0.0
    %1017 = vmatpush1.msra.mxu0 0.0
    %1018 = vmatprep.subr.mxu0 0.0
    %1019 = vmatpush1.msra.mxu0 0.0
    %1020 = vmatprep.subr.mxu0 0.0
    %1021 = vmatpush1.msra.mxu0 0.0
    %1022 = vmatprep.subr.mxu0 0.0
    %1023 = vmatpush1.msra.mxu0 0.0
    %1024 = vmatprep.subr.mxu0 0.0
    %1025 = vmatpush1.msra.mxu0 0.0
    %1026 = vmatprep.subr.mxu0 0.0
    %1027 = vmatpush1.msra.mxu0 0.0
    %1028 = vmatprep.mubr.f32.mxu0 0.0
    %1029 = vmatmul.mubr.f32.gmra.mrb[0].mxu0 %v962
    %v1030 = vpop.f32.mrb[0].mxu0
    %v1031 = vadd.f32 %v61, %v1030
    %v1032 = vpop.f32.mrb[0].mxu0
    %1033 = vdwg.mxu0
    %v1034 = vmax.f32 %v1031, 0.0
    %1035 = vst [vmem:[%s4] sm:$0x1] %v1034
    // Predicated region
    $region18: #{graph_action_network.1} parent=1 // pred_check
      _
    $region19: #{graph_action_network.1} parent=1 // pred_check_branch
      %1037 = sbr.rel (0) target = $region21
    $region20: #{graph_action_network.1} parent=1 // pred_region
      _
    $region21: #{graph_action_network.1} parent=1 // pred_fallthru
      _
    // Predicated region
    $region22: #{graph_action_network.1} parent=1 // pred_check
      _
    $region23: #{graph_action_network.1} parent=1 // pred_check_branch
      %1039 = sbr.rel (0) target = $region25
    $region24: #{graph_action_network.1} parent=1 // pred_region
      _
    $region25: #{graph_action_network.1} parent=1 // pred_fallthru
      _
    %1040 = vsyncpa [#allocation6], 1
    %1041 = vsyncpa [#allocation8], 1

</llo_original>
